<compile_context>
chip_gen: v5e
topology: v5e:2x2
jax: 0.10.0
libtpu: 0.0.40
codegen_flags: <defaults>
</compile_context>

<pallas_src>
import functools

import jax
import jax.numpy as jnp
from jax import lax
from jax.experimental import pallas as pl
from jax.experimental.pallas import tpu as pltpu


def _round_up(x, m):
    return ((x + m - 1) // m) * m


def _model_kernel(obs_ref, w1_ref, b1_ref, w23_ref, b23_ref,
                  logp_ref, value_ref, *, n_actions):
    # Feature extraction: Linear(obs_dim -> 128) + ReLU   (MXU + VPU)
    feats = jnp.dot(obs_ref[...], w1_ref[...], preferred_element_type=jnp.float32)
    feats = jnp.maximum(feats + b1_ref[...], 0.0)

    # Fused policy + value heads: one (TB, H) x (H, 128) matmul.
    # Lanes [0:A] = policy logits, lane A = value, lanes > A = 0 padding.
    head = jnp.dot(feats, w23_ref[...], preferred_element_type=jnp.float32)
    head = head + b23_ref[...]

    # Masked, numerically-stable log-softmax over the logit lanes only.
    lane = lax.broadcasted_iota(jnp.int32, head.shape, dimension=1)
    is_logit = lane < n_actions

    masked = jnp.where(is_logit, head, -jnp.inf)
    m = jnp.max(masked, axis=-1, keepdims=True)
    p = jnp.exp(masked - m)                      # exp(-inf) = 0 on pad lanes
    lse = m + jnp.log(jnp.sum(p, axis=-1, keepdims=True))

    # Narrow, exact-width outputs (no 128-lane slab written to HBM).
    logp_ref[...] = (head - lse)[:, :n_actions]
    value_ref[...] = head[:, n_actions:n_actions + 1]


def model_forward(obs, params, *, block_b=1024):
    """Returns (log_probs, value): the normalized Categorical logits (B, A)
    and the value estimate (B,)."""
    w1, b1, w2, b2, w3, b3 = params
    B, D = obs.shape
    H = w1.shape[1]
    A = w2.shape[1]

    # Fused, lane-padded head weights / bias (layout plumbing, done once).
    HEAD = _round_up(A + 1, 128)
    w23 = jnp.zeros((H, HEAD), jnp.float32)
    w23 = w23.at[:, :A].set(w2)
    w23 = w23.at[:, A].set(w3[:, 0])
    b23 = jnp.zeros((1, HEAD), jnp.float32)
    b23 = b23.at[:, :A].set(b2[0])
    b23 = b23.at[:, A].set(b3[0, 0])

    # Batch tiling: large tiles amortize the ~0.35us/step overhead; always keep
    # >= 2 grid steps when B >= 16 so both v7x TensorCores get work. No padding
    # of obs: Pallas handles the partial tail block (OOB writes are dropped).
    if B >= 16:
        TB = min(block_b, _round_up(pl.cdiv(B, 2), 8))
    else:
        TB = _round_up(max(B, 1), 8)
    grid = (pl.cdiv(B, TB),)

    kernel = functools.partial(_model_kernel, n_actions=A)

    logp, value = pl.pallas_call(
        kernel,
        out_shape=(
            jax.ShapeDtypeStruct((B, A), jnp.float32),
            jax.ShapeDtypeStruct((B, 1), jnp.float32),
        ),
        grid=grid,
        in_specs=[
            pl.BlockSpec((TB, D), lambda i: (i, 0)),     # obs tile, marches over B
            pl.BlockSpec((D, H), lambda i: (0, 0)),      # W1 (VMEM-resident)
            pl.BlockSpec((1, H), lambda i: (0, 0)),      # b1
            pl.BlockSpec((H, HEAD), lambda i: (0, 0)),   # fused head weights
            pl.BlockSpec((1, HEAD), lambda i: (0, 0)),   # fused head bias
        ],
        out_specs=(
            pl.BlockSpec((TB, A), lambda i: (i, 0)),     # logp, lane-exact
            pl.BlockSpec((TB, 1), lambda i: (i, 0)),     # value column
        ),
        compiler_params=pltpu.CompilerParams(
            dimension_semantics=("parallel",)),          # shards across v7x TCs
    )(obs, w1, b1, w23, b23)

    return logp, value.reshape(-1)


def init_params(key, obs_dim, action_dim, hidden=128):
    k1, k2, k3, k4, k5, k6 = jax.random.split(key, 6)

    # Mimics PyTorch Linear's U(-1/sqrt(fan_in), 1/sqrt(fan_in)) init.
    def lin(kw, kb, fan_in, fan_out):
        bound = 1.0 / jnp.sqrt(fan_in)
        w = jax.random.uniform(kw, (fan_in, fan_out), jnp.float32, -bound, bound)
        b = jax.random.uniform(kb, (1, fan_out), jnp.float32, -bound, bound)
        return w, b

    w1, b1 = lin(k1, k2, obs_dim, hidden)
    w2, b2 = lin(k3, k4, hidden, action_dim)
    w3, b3 = lin(k5, k6, hidden, 1)
    return (w1, b1, w2, b2, w3, b3)


def _reference(obs, params):
    w1, b1, w2, b2, w3, b3 = params
    feats = jnp.maximum(obs @ w1 + b1, 0.0)
    logits = feats @ w2 + b2
    logp = jax.nn.log_softmax(logits, axis=-1)
    value = (feats @ w3 + b3).reshape(-1)
    return logp, value


if __name__ == "__main__":
    key = jax.random.PRNGKey(0)
    k_obs, k_obs2, k_obs3, k_par = jax.random.split(key, 4)

    OBS = 32   # observation_space
    ACT = 8    # action_space
    params = init_params(k_par, OBS, ACT)

    fwd = jax.jit(model_forward)

    def check(obs):
        B = obs.shape[0]
        logp, value = fwd(obs, params)
        jax.block_until_ready((logp, value))
        logp_ref, value_ref = _reference(obs, params)
        assert logp.shape == (B, ACT) and value.shape == (B,)
        assert jnp.allclose(logp, logp_ref, atol=1e-5)
        assert jnp.allclose(value, value_ref, atol=1e-5)

    # Small batch (single grid step, block larger than B).
    check(jax.random.normal(k_obs, (8, OBS), jnp.float32))

    # Non-aligned batch: 2 parallel grid steps, ragged tail handled by Pallas.
    check(jax.random.normal(k_obs2, (300, OBS), jnp.float32))

    # Larger batch: exercises the block_b=1024 tile with a partial last block.
    check(jax.random.normal(k_obs3, (2500, OBS), jnp.float32))

    print("KERNEL_OK")
</pallas_src>

<mosaic_0001>
module attributes {stable_mosaic.version = 11 : i64} {
  func.func @_model_kernel(%arg0: i32, %arg1: memref<8x32xf32, #tpu.memory_space<vmem>>, %arg2: memref<32x128xf32, #tpu.memory_space<vmem>>, %arg3: memref<1x128xf32, #tpu.memory_space<vmem>>, %arg4: memref<128x128xf32, #tpu.memory_space<vmem>>, %arg5: memref<1x128xf32, #tpu.memory_space<vmem>>, %arg6: memref<8x8xf32, #tpu.memory_space<vmem>>, %arg7: memref<8x1xf32, #tpu.memory_space<vmem>>) attributes {dimension_semantics = [#tpu.dimension_semantics<parallel>], iteration_bounds = array<i64: 1>, scalar_prefetch = 0 : i64, scratch_operands = 0 : i64, tpu.core_type = #tpu.core_type<tc>, window_params = [{transform_indices = @transform_0, window_bounds = array<i64: 8, 32>}, {pipeline_mode = #tpu.pipeline_mode<synchronous>, transform_indices = @transform_1, window_bounds = array<i64: 32, 128>}, {pipeline_mode = #tpu.pipeline_mode<synchronous>, transform_indices = @transform_2, window_bounds = array<i64: 1, 128>}, {pipeline_mode = #tpu.pipeline_mode<synchronous>, transform_indices = @transform_3, window_bounds = array<i64: 128, 128>}, {pipeline_mode = #tpu.pipeline_mode<synchronous>, transform_indices = @transform_4, window_bounds = array<i64: 1, 128>}, {transform_indices = @transform_5, window_bounds = array<i64: 8, 8>}, {transform_indices = @transform_6, window_bounds = array<i64: 8, 1>}]} {
    %c0 = arith.constant 0 : index
    %c0_0 = arith.constant 0 : index
    %0 = vector.load %arg1[%c0, %c0_0] : memref<8x32xf32, #tpu.memory_space<vmem>>, vector<8x32xf32>
    %c0_1 = arith.constant 0 : index
    %c0_2 = arith.constant 0 : index
    %1 = vector.load %arg2[%c0_1, %c0_2] : memref<32x128xf32, #tpu.memory_space<vmem>>, vector<32x128xf32>
    %cst = arith.constant dense<0.000000e+00> : vector<8x128xf32>
    %2 = tpu.matmul %0, %1, %cst {dimension_numbers = #tpu.dot_dimension_numbers<[1], [0], [0], [1], [0, 0, 1, 1], [], []>} : vector<8x32xf32>, vector<32x128xf32>, vector<8x128xf32> -> vector<8x128xf32>
    %c0_3 = arith.constant 0 : index
    %c0_4 = arith.constant 0 : index
    %3 = vector.load %arg3[%c0_3, %c0_4] : memref<1x128xf32, #tpu.memory_space<vmem>>, vector<1x128xf32>
    %4 = vector.broadcast %3 : vector<1x128xf32> to vector<8x128xf32>
    %5 = arith.addf %2, %4 : vector<8x128xf32>
    %cst_5 = arith.constant 0.000000e+00 : f32
    %6 = vector.broadcast %cst_5 : f32 to vector<8x128xf32>
    %7 = arith.maximumf %5, %6 : vector<8x128xf32>
    %c0_6 = arith.constant 0 : index
    %c0_7 = arith.constant 0 : index
    %8 = vector.load %arg4[%c0_6, %c0_7] : memref<128x128xf32, #tpu.memory_space<vmem>>, vector<128x128xf32>
    %cst_8 = arith.constant dense<0.000000e+00> : vector<8x128xf32>
    %9 = tpu.matmul %7, %8, %cst_8 {dimension_numbers = #tpu.dot_dimension_numbers<[1], [0], [0], [1], [0, 0, 1, 1], [], []>} : vector<8x128xf32>, vector<128x128xf32>, vector<8x128xf32> -> vector<8x128xf32>
    %c0_9 = arith.constant 0 : index
    %c0_10 = arith.constant 0 : index
    %10 = vector.load %arg5[%c0_9, %c0_10] : memref<1x128xf32, #tpu.memory_space<vmem>>, vector<1x128xf32>
    %11 = vector.broadcast %10 : vector<1x128xf32> to vector<8x128xf32>
    %12 = arith.addf %9, %11 : vector<8x128xf32>
    %13 = tpu.iota {dimensions = array<i32: 1>} : vector<8x128xi32>
    %c8_i32 = arith.constant 8 : i32
    %14 = vector.broadcast %c8_i32 : i32 to vector<8x128xi32>
    %15 = arith.cmpi slt, %13, %14 : vector<8x128xi32>
    %cst_11 = arith.constant 0xFF800000 : f32
    %16 = vector.broadcast %cst_11 : f32 to vector<8x128xf32>
    %17 = arith.select %15, %12, %16 : vector<8x128xi1>, vector<8x128xf32>
    %cst_12 = arith.constant dense<0xFF800000> : vector<8xf32>
    %18 = vector.multi_reduction <maximumf>, %17, %cst_12 [1] : vector<8x128xf32> to vector<8xf32>
    %19 = vector.shape_cast %18 : vector<8xf32> to vector<8x1xf32>
    %20 = vector.broadcast %19 : vector<8x1xf32> to vector<8x128xf32>
    %21 = arith.subf %17, %20 : vector<8x128xf32>
    %22 = math.exp %21 : vector<8x128xf32>
    %cst_13 = arith.constant dense<0.000000e+00> : vector<8xf32>
    %23 = vector.multi_reduction <add>, %22, %cst_13 [1] : vector<8x128xf32> to vector<8xf32>
    %24 = vector.shape_cast %23 : vector<8xf32> to vector<8x1xf32>
    %25 = math.log %24 : vector<8x1xf32>
    %26 = arith.addf %19, %25 : vector<8x1xf32>
    %27 = vector.broadcast %26 : vector<8x1xf32> to vector<8x128xf32>
    %28 = arith.subf %12, %27 : vector<8x128xf32>
    %29 = vector.extract_strided_slice %28 {offsets = [0, 0], sizes = [8, 8], strides = [1, 1]} : vector<8x128xf32> to vector<8x8xf32>
    %c0_14 = arith.constant 0 : index
    %c0_15 = arith.constant 0 : index
    %30 = vector.load %arg6[%c0_14, %c0_15] : memref<8x8xf32, #tpu.memory_space<vmem>>, vector<8x8xf32>
    tpu.vector_store %arg6[%c0_14, %c0_15], %29 {strides = array<i32>} : memref<8x8xf32, #tpu.memory_space<vmem>>, vector<8x8xf32>,
    %31 = vector.extract_strided_slice %12 {offsets = [0, 8], sizes = [8, 1], strides = [1, 1]} : vector<8x128xf32> to vector<8x1xf32>
    %c0_16 = arith.constant 0 : index
    %c0_17 = arith.constant 0 : index
    %32 = vector.load %arg7[%c0_16, %c0_17] : memref<8x1xf32, #tpu.memory_space<vmem>>, vector<8x1xf32>
    tpu.vector_store %arg7[%c0_16, %c0_17], %31 {strides = array<i32>} : memref<8x1xf32, #tpu.memory_space<vmem>>, vector<8x1xf32>,
    return
  }
  func.func @transform_0(%arg0: i32) -> (i32, i32) {
    %c0_i32 = arith.constant 0 : i32
    %c0_i32_0 = arith.constant 0 : i32
    return %arg0, %c0_i32 : i32, i32
  }
  func.func @transform_1(%arg0: i32) -> (i32, i32) {
    %c0_i32 = arith.constant 0 : i32
    %c0_i32_0 = arith.constant 0 : i32
    %c0_i32_1 = arith.constant 0 : i32
    return %c0_i32, %c0_i32_0 : i32, i32
  }
  func.func @transform_2(%arg0: i32) -> (i32, i32) {
    %c0_i32 = arith.constant 0 : i32
    %c0_i32_0 = arith.constant 0 : i32
    %c0_i32_1 = arith.constant 0 : i32
    return %c0_i32, %c0_i32_0 : i32, i32
  }
  func.func @transform_3(%arg0: i32) -> (i32, i32) {
    %c0_i32 = arith.constant 0 : i32
    %c0_i32_0 = arith.constant 0 : i32
    %c0_i32_1 = arith.constant 0 : i32
    return %c0_i32, %c0_i32_0 : i32, i32
  }
  func.func @transform_4(%arg0: i32) -> (i32, i32) {
    %c0_i32 = arith.constant 0 : i32
    %c0_i32_0 = arith.constant 0 : i32
    %c0_i32_1 = arith.constant 0 : i32
    return %c0_i32, %c0_i32_0 : i32, i32
  }
  func.func @transform_5(%arg0: i32) -> (i32, i32) {
    %c0_i32 = arith.constant 0 : i32
    %c0_i32_0 = arith.constant 0 : i32
    return %arg0, %c0_i32 : i32, i32
  }
  func.func @transform_6(%arg0: i32) -> (i32, i32) {
    %c0_i32 = arith.constant 0 : i32
    %c0_i32_0 = arith.constant 0 : i32
    return %arg0, %c0_i32 : i32, i32
  }
}

</mosaic_0001>

<llo_original>
// kernel: model_forward.1
$region0: #{model_forward.1}
  #allocation0 [shape = 'u32[]', space=smem, size = 0x4, offset = 0x4, fixed_abs, tag = 'smem constant byte address 0x4 - core index']
  #allocation1 [shape = 'u32[72,128]{1,0:T(1,128)}', space=vmem, size = 0x9000, scoped, tag = 'internal scratch']
  %s0 = inlined_call_operand.vmem [shape: f32[8,32], index: 0, kind: input, shape index: {}]
  %s1 = inlined_call_operand.vmem [shape: f32[32,128], index: 1, kind: input, shape index: {}]
  %s2 = inlined_call_operand.vmem [shape: f32[1,128], index: 2, kind: input, shape index: {}]
  %s3 = inlined_call_operand.vmem [shape: f32[128,128], index: 3, kind: input, shape index: {}]
  %s4 = inlined_call_operand.vmem [shape: f32[1,128], index: 4, kind: input, shape index: {}]
  %s5 = inlined_call_operand.hbm [shape: f32[8,8], index: 5, kind: output, shape index: {0}]
  %s6 = inlined_call_operand.vmem [shape: f32[8,1], index: 6, kind: output, shape index: {1}]
  %7 = xla_tuple %s5, %s6
  %s8 = sld [smem:[#allocation0]]
  $region38: #{model_forward.1} parent=0
    _
  %s10 = ssub.s32 1, %s8
  %s11 = scalar_select 0, %s10, %s8
  $region1: #{model_forward.1} parent=0
    #allocation2 [shape = 'u8[4096]{0}', space=vmem, size = 0x1000, scoped, tag = 'output window, operand 0, single buffered']
    #allocation3 [shape = 's32[1]{0}', space=sflag, size = 0x4, scoped, tag = 'scoped memory for model_forward.1']
    %12 = vsyncpa [#allocation3], 0
    // Predicated region
    $region2: #{model_forward.1} parent=1 // pred_check
      _
    $region3: #{model_forward.1} parent=1 // pred_check_branch
      %14 = sbr.rel (0) target = $region5
    $region4: #{model_forward.1} parent=1 // pred_region
      _
    $region5: #{model_forward.1} parent=1 // pred_fallthru
      _
    // Predicated region
    $region6: #{model_forward.1} parent=1 // pred_check
      _
    $region7: #{model_forward.1} parent=1 // pred_check_branch
      %16 = sbr.rel (0) target = $region9
    $region8: #{model_forward.1} parent=1 // pred_region
      _
    $region9: #{model_forward.1} parent=1 // pred_fallthru
      _
    // Predicated region
    $region10: #{model_forward.1} parent=1 // pred_check
      _
    $region11: #{model_forward.1} parent=1 // pred_check_branch
      %18 = sbr.rel (0) target = $region13
    $region12: #{model_forward.1} parent=1 // pred_region
      _
    $region13: #{model_forward.1} parent=1 // pred_fallthru
      _
    // Predicated region
    $region14: #{model_forward.1} parent=1 // pred_check
      _
    $region15: #{model_forward.1} parent=1 // pred_check_branch
      %20 = sbr.rel (0) target = $region17
    $region16: #{model_forward.1} parent=1 // pred_region
      _
    $region17: #{model_forward.1} parent=1 // pred_fallthru
      _
    // Predicated region
    $region18: #{model_forward.1} parent=1 // pred_check
      _
    $region19: #{model_forward.1} parent=1 // pred_check_branch
      %22 = sbr.rel (0) target = $region21
    $region20: #{model_forward.1} parent=1 // pred_region
      _
    $region21: #{model_forward.1} parent=1 // pred_fallthru
      _
    %v23 = vld [vmem:[%s0] sm:$0xff]
    %v24 = vld [vmem:[%s1] sm:$0xff]
    %v25 = vld [vmem:[%s1 + $0x8] sm:$0xff]
    %v26 = vld [vmem:[%s1 + $0x10] sm:$0xff]
    %v27 = vld [vmem:[%s1 + $0x18] sm:$0xff]
    %v28 = vld [vmem:[%s2] sm:$0x1]
    %v30 = vperm.slane %v28, 0
    %vm32 = vcmask 261120
    %v34 = vsel %vm32, %v23, 0
    %36 = vmatpush.msra.mxu0 0.0
    %37 = vmatpush.msra.mxu0 0.0
    %38 = vmatpush.msra.mxu0 0.0
    %39 = vmatpush.msra.mxu0 0.0
    %40 = vmatpush.msra.mxu0 0.0
    %41 = vmatpush.msra.mxu0 0.0
    %42 = vmatpush.msra.mxu0 0.0
    %43 = vmatpush.msra.mxu0 0.0
    %44 = vmatpush.msra.mxu0 0.0
    %45 = vmatpush.msra.mxu0 0.0
    %46 = vmatpush.msra.mxu0 0.0
    %47 = vmatpush.msra.mxu0 0.0
    %48 = vmatpush.msra.mxu0 %v27
    %49 = vmatpush.msra.mxu0 %v26
    %50 = vmatpush.msra.mxu0 %v25
    %51 = vmatpush.msra.mxu0 %v24
    %52 = vmatmul.f32.gmra.mxu0 %v34
    %v53 = vpop.f32.mrf.mxu0
    %v54 = vadd.f32 %v30, %v53
    %55 = vdwg.mxu0
    %v56 = vmax.f32 %v54, 0.0
    %v57 = vld [vmem:[%s3] sm:$0xff]
    %v58 = vld [vmem:[%s3 + $0x8] sm:$0xff]
    %v59 = vld [vmem:[%s3 + $0x10] sm:$0xff]
    %v60 = vld [vmem:[%s3 + $0x18] sm:$0xff]
    %v61 = vld [vmem:[%s3 + $0x20] sm:$0xff]
    %v62 = vld [vmem:[%s3 + $0x28] sm:$0xff]
    %v63 = vld [vmem:[%s3 + $0x30] sm:$0xff]
    %v64 = vld [vmem:[%s3 + $0x38] sm:$0xff]
    %v65 = vld [vmem:[%s3 + $0x40] sm:$0xff]
    %v66 = vld [vmem:[%s3 + $0x48] sm:$0xff]
    %v67 = vld [vmem:[%s3 + $0x50] sm:$0xff]
    %v68 = vld [vmem:[%s3 + $0x58] sm:$0xff]
    %v69 = vld [vmem:[%s3 + $0x60] sm:$0xff]
    %v70 = vld [vmem:[%s3 + $0x68] sm:$0xff]
    %v71 = vld [vmem:[%s3 + $0x70] sm:$0xff]
    %v72 = vld [vmem:[%s3 + $0x78] sm:$0xff]
    %v73 = vld [vmem:[%s4] sm:$0x1]
    %v75 = vperm.slane %v73, 0
    %77 = vmatpush.msra.mxu0 %v72
    %78 = vmatpush.msra.mxu0 %v71
    %79 = vmatpush.msra.mxu0 %v70
    %80 = vmatpush.msra.mxu0 %v69
    %81 = vmatpush.msra.mxu0 %v68
    %82 = vmatpush.msra.mxu0 %v67
    %83 = vmatpush.msra.mxu0 %v66
    %84 = vmatpush.msra.mxu0 %v65
    %85 = vmatpush.msra.mxu0 %v64
    %86 = vmatpush.msra.mxu0 %v63
    %87 = vmatpush.msra.mxu0 %v62
    %88 = vmatpush.msra.mxu0 %v61
    %89 = vmatpush.msra.mxu0 %v60
    %90 = vmatpush.msra.mxu0 %v59
    %91 = vmatpush.msra.mxu0 %v58
    %92 = vmatpush.msra.mxu0 %v57
    %93 = vmatmul.f32.gmra.mxu0 %v56
    %v94 = vpop.f32.mrf.mxu0
    %v95 = vadd.f32 %v75, %v94
    %96 = vdwg.mxu0
    %v97 = vlaneseq
    %v98 = vand.u32 %v97, 127
    %vm99 = vcmp.lt.s32.totalorder %v98, 8
    %v100 = vsel %vm99, %v95, -inf
    %101 = vmax.xlane.f32.xlu0 %v100
    %v102 = vpop.xlane.xlu0 %101
    %v103 = vsub.f32 %v100, %v102
    %v104 = vmul.f32 %v103, 1.442695
    %v105 = vpow.pop %v104
    %106 = vadd.xlane.f32.xlu0 %v105
    %v107 = vpop.xlane.xlu0 %106
    %v108 = vlog2.pop %v107
    %v109 = vmul.f32 %v108, 0.6931472
    %v110 = vadd.f32 %v102, %v109
    %v111 = vsub.f32 %v95, %v110
    %vm112 = vcmask 64512
    %113 = vst.msk [vmem:[#allocation2] sm:$0xff] %vm112, %v111
    %115 = vrot.lane.b32.xlu0 %v95, 120
    %v116 = vpop.permute.xlu0 %115
    %vm118 = vcmask 7168
    %119 = vst.msk [vmem:[%s6] sm:$0xff] %vm118, %v116
    // Predicated region
    $region22: #{model_forward.1} parent=1 // pred_check
      _
    $region23: #{model_forward.1} parent=1 // pred_check_branch
      %121 = sbr.rel (0) target = $region25
    $region24: #{model_forward.1} parent=1 // pred_region
      %123 = vsyncadd [#allocation3], 0
      %s125 = sshll.u32 [#allocation2], 4
      %s126 = int_to_ptr.vmem [resolvable:$true] %s125
      %s127 = sshll.u32 %s5, 4
      %s128 = int_to_ptr.hbm [resolvable:$true] %s127
      %130 = dma.vmem_to_hbm [thread:$0]  %s126, 128, %s128, [#allocation3]
    $region25: #{model_forward.1} parent=1 // pred_fallthru
      _
    // Predicated region
    $region26: #{model_forward.1} parent=1 // pred_check
      _
    $region27: #{model_forward.1} parent=1 // pred_check_branch
      %132 = sbr.rel (0) target = $region29
    $region28: #{model_forward.1} parent=1 // pred_region
      _
    $region29: #{model_forward.1} parent=1 // pred_fallthru
      _
    // Predicated region
    $region30: #{model_forward.1} parent=1 // pred_check
      _
    $region31: #{model_forward.1} parent=1 // pred_check_branch
      %134 = sbr.rel (0) target = $region33
    $region32: #{model_forward.1} parent=1 // pred_region
      %136 = dma.done [#allocation3], 128
    $region33: #{model_forward.1} parent=1 // pred_fallthru
      _
    // Predicated region
    $region34: #{model_forward.1} parent=1 // pred_check
      _
    $region35: #{model_forward.1} parent=1 // pred_check_branch
      %138 = sbr.rel (0) target = $region37
    $region36: #{model_forward.1} parent=1 // pred_region
      _
    $region37: #{model_forward.1} parent=1 // pred_fallthru
      _
    %139 = vsyncpa [#allocation3], 1

</llo_original>
